<compile_context>
chip_gen: v5e
topology: v5e:2x2
jax: 0.10.0
libtpu: 0.0.40
codegen_flags: <defaults>
</compile_context>

<pallas_src>
import functools
import math

import jax
import jax.numpy as jnp
from jax import lax
from jax.experimental import pallas as pl
from jax.experimental.pallas import tpu as pltpu


def _round_up(n, m):
    return ((n + m - 1) // m) * m


def _cdiv(a, b):
    return (a + b - 1) // b


def gknn_kernel(x_ref, w_ref, b_ref, o_ref, *, rows_per_seq):
    # x_ref : (TL, C)    packed rows; C = P*Ec lanes, one super-row per sublane row
    # w_ref : (C, 3*C)   fused [W_prev | W_mid | W_next] block-Toeplitz taps (resident)
    # b_ref : (1, C)     bias tiled over the P packed positions (resident)
    # o_ref : (TL, C)
    x = x_ref[...]
    tl, c = x.shape

    # One fused MXU matmul: (TL, C) @ (C, 3C) -> (TL, 3C).
    p = jnp.dot(x, w_ref[...], preferred_element_type=jnp.float32)
    p_prev = p[:, :c]          # contributes to the NEXT super-row (rolled down by 1)
    p_mid = p[:, c:2 * c]      # contributes to this super-row
    p_next = p[:, 2 * c:]      # contributes to the PREVIOUS super-row (rolled up by 1)

    # Sequence-boundary masks computed on the fly (tiles hold whole sequences, so the
    # position within a sequence is just row % rows_per_seq).
    pos = lax.broadcasted_iota(jnp.int32, (tl, 1), 0) % rows_per_seq
    keep_prev = (pos != 0).astype(jnp.float32)
    keep_next = (pos != rows_per_seq - 1).astype(jnp.float32)

    # Output-side sublane shifts (XLU) + masks reproduce Conv1d's zero padding at
    # sequence ends (and block wrap-around / cross-sequence rows within the tile).
    from_prev = pltpu.roll(p_prev, 1, 0) * keep_prev
    from_next = pltpu.roll(p_next, tl - 1, 0) * keep_next

    acc = from_prev + p_mid + from_next + b_ref[...].astype(jnp.float32)
    o_ref[...] = jnp.maximum(acc, 0.0).astype(o_ref.dtype)


def _choose_packing(E, L):
    """Smallest P with P | L, (P*E) % 128 == 0 (lane-dense rows) and P*E <= 1024."""
    for p in range(1, min(L, 128) + 1):
        if L % p == 0 and (p * E) % 128 == 0 and p * E <= 1024:
            return p, E                    # packed path, no channel padding
    return 1, _round_up(E, 128)            # fallback: pad channels to 128 lanes


def gknn_forward(x, weight, bias):
    """x: (B, L, E) float32, weight: (E_out=E, E_in=E, 3), bias: (E,)."""
    B, L, E = x.shape
    dtype = x.dtype
    itemsize = jnp.dtype(dtype).itemsize

    P, Ec = _choose_packing(E, L)
    C = P * Ec                 # lane width of one packed row (multiple of 128)
    Ls = L // P                # packed rows (super-rows) per sequence
    rows = B * Ls

    # ---- fused block-Toeplitz conv taps: (C, 3C) = [W_prev | W_mid | W_next] ----
    w_t = jnp.transpose(weight, (2, 1, 0)).astype(dtype)          # (3, E_in, E_out)
    if Ec > E:
        w_t = jnp.pad(w_t, ((0, 0), (0, Ec - E), (0, Ec - E)))
    w0, w1, w2 = w_t[0], w_t[1], w_t[2]                           # Wk = weight[:, :, k].T
    w_mid = jnp.zeros((C, C), dtype)
    for i in range(P):
        w_mid = w_mid.at[i * Ec:(i + 1) * Ec, i * Ec:(i + 1) * Ec].set(w1)
        if i + 1 < P:
            # x[pos i] @ W0 feeds output pos i+1 ; x[pos i+1] @ W2 feeds output pos i.
            w_mid = w_mid.at[i * Ec:(i + 1) * Ec, (i + 1) * Ec:(i + 2) * Ec].set(w0)
            w_mid = w_mid.at[(i + 1) * Ec:(i + 2) * Ec, i * Ec:(i + 1) * Ec].set(w2)
    w_prev = jnp.zeros((C, C), dtype).at[(P - 1) * Ec:, :Ec].set(w0)   # crosses super-row
    w_next = jnp.zeros((C, C), dtype).at[:Ec, (P - 1) * Ec:].set(w2)   # crosses super-row
    w_cat = jnp.concatenate([w_prev, w_mid, w_next], axis=1)      # (C, 3C)

    b_row = jnp.tile(jnp.pad(bias.astype(dtype), (0, Ec - E)), P).reshape(1, C)

    # ---- generation-aware tile sizing ----
    try:
        vmem_cap = int(pltpu.get_tpu_info().vmem_capacity_bytes)
    except Exception:
        vmem_cap = 64 * 1024 * 1024        # conservative (v7x per-core) default
    try:
        kind = jax.devices()[0].device_kind.lower()
    except Exception:
        kind = ""
    is_v7 = "v7" in kind

    # per-row VMEM: 2x2 pipelined x/out + (TL,3C) fused product + roll temps + slack.
    per_row_bytes = 10 * C * itemsize + 1024
    weight_bytes = C * 3 * C * itemsize + C * itemsize
    budget = int(0.6 * vmem_cap)
    max_rows = max(8, (budget - weight_bytes) // per_row_bytes)
    row_cap = 4096 if is_v7 else 1024      # v7x: amortize step overhead vs 3.2 TB/s HBM
    target_rows = int(min(row_cap, max_rows))
    # TODO(synk): for very long sequences (Ls alone near target_rows), add
    # intra-sequence L-tiling with a 1-super-row halo instead of whole-sequence tiles.

    # Whole sequences per tile, with TL % 8 == 0 (sublane alignment).
    align = 8 // math.gcd(Ls, 8)
    spt = max(1, min(B, max(1, target_rows // Ls)))
    if is_v7:
        # Keep >= 2 grid tiles so both TensorCores get work, when that is possible.
        half = max(1, _cdiv(B, 2))
        if _round_up(half, align) < _round_up(B, align):
            spt = min(spt, half)
    spt = _round_up(spt, align)
    n_tiles = _cdiv(B, spt)
    B_pad = n_tiles * spt
    TL = spt * Ls
    rows_pad = B_pad * Ls
    # TODO(synk): per-sequence row padding (instead of whole padded sequences) would
    # further cap the waste when L is awkward and B is tiny.
    # TODO(synk): optional bf16 streaming (halves HBM bytes) kept off: reference is f32.

    # ---- pack x: zero-copy reshape when no channel padding is needed ----
    if Ec == E:
        x_rows = x.reshape(rows, C)
    else:
        x_rows = jnp.pad(x, ((0, 0), (0, 0), (0, Ec - E))).reshape(rows, C)
    if rows_pad > rows:
        x_rows = jnp.pad(x_rows, ((0, rows_pad - rows), (0, 0)))

    vmem_limit = int(min(int(0.85 * vmem_cap),
                         max(32 * 1024 * 1024,
                             per_row_bytes * TL + weight_bytes + (2 << 20))))

    out_rows = pl.pallas_call(
        functools.partial(gknn_kernel, rows_per_seq=Ls),
        out_shape=jax.ShapeDtypeStruct((rows_pad, C), dtype),
        grid_spec=pltpu.PrefetchScalarGridSpec(
            num_scalar_prefetch=0,
            grid=(n_tiles,),
            in_specs=[
                pl.BlockSpec((TL, C), lambda i: (i, 0)),            # packed x (pipelined)
                pl.BlockSpec(memory_space=pltpu.MemorySpace.VMEM),  # fused weights (resident)
                pl.BlockSpec(memory_space=pltpu.MemorySpace.VMEM),  # bias (resident)
            ],
            out_specs=pl.BlockSpec((TL, C), lambda i: (i, 0)),
        ),
        compiler_params=pltpu.CompilerParams(
            dimension_semantics=("parallel",),
            vmem_limit_bytes=vmem_limit,
        ),
    )(x_rows, w_cat, b_row)

    out = out_rows[:rows] if rows_pad > rows else out_rows
    if Ec == E:
        return out.reshape(B, L, E)
    return out.reshape(B, L, Ec)[..., :E]


def gknn_reference(x, weight, bias):
    """Pure-JAX reference matching PyTorch F.relu(conv1d(x.transpose(1,2))).transpose(1,2)."""
    x_ncw = jnp.transpose(x, (0, 2, 1))
    y = lax.conv_general_dilated(
        x_ncw, weight, window_strides=(1,), padding=((1, 1),),
        dimension_numbers=("NCH", "OIH", "NCH"))
    y = y + bias[None, :, None]
    y = jnp.maximum(y, 0.0)
    return jnp.transpose(y, (0, 2, 1))


if __name__ == "__main__":
    B, L, E = 2, 8, 32  # batch, sequence length, embed_size

    key = jax.random.PRNGKey(0)
    kx, kw, kb = jax.random.split(key, 3)

    x = jax.random.normal(kx, (B, L, E), dtype=jnp.float32)
    # Deterministic "Conv1d(embed_size, embed_size, 3)" parameters.
    fan_in = E * 3
    bound = 1.0 / (fan_in ** 0.5)
    weight = jax.random.uniform(kw, (E, E, 3), minval=-bound, maxval=bound,
                                dtype=jnp.float32)
    bias = jax.random.uniform(kb, (E,), minval=-bound, maxval=bound,
                              dtype=jnp.float32)

    out = gknn_forward(x, weight, bias)
    out = jax.block_until_ready(out)

    ref = gknn_reference(x, weight, bias)
    assert out.shape == (B, L, E)
    assert jnp.allclose(out, ref, atol=1e-5, rtol=1e-5), "mismatch vs reference"

    print("KERNEL_OK")
</pallas_src>

<mosaic_0001>
module attributes {stable_mosaic.version = 11 : i64} {
  func.func @gknn_kernel(%arg0: i32, %arg1: memref<8x128xf32, #tpu.memory_space<vmem>>, %arg2: memref<128x384xf32, #tpu.memory_space<vmem>>, %arg3: memref<1x128xf32, #tpu.memory_space<vmem>>, %arg4: memref<8x128xf32, #tpu.memory_space<vmem>>) attributes {dimension_semantics = [#tpu.dimension_semantics<parallel>], iteration_bounds = array<i64: 1>, scalar_prefetch = 0 : i64, scratch_operands = 0 : i64, tpu.core_type = #tpu.core_type<tc>, window_params = [{transform_indices = @transform_0, window_bounds = array<i64: 8, 128>}, {pipeline_mode = #tpu.pipeline_mode<synchronous>, transform_indices = @transform_1, window_bounds = array<i64: 128, 384>}, {pipeline_mode = #tpu.pipeline_mode<synchronous>, transform_indices = @transform_2, window_bounds = array<i64: 1, 128>}, {transform_indices = @transform_3, window_bounds = array<i64: 8, 128>}]} {
    %c0 = arith.constant 0 : index
    %c0_0 = arith.constant 0 : index
    %0 = vector.load %arg1[%c0, %c0_0] : memref<8x128xf32, #tpu.memory_space<vmem>>, vector<8x128xf32>
    %c0_1 = arith.constant 0 : index
    %c0_2 = arith.constant 0 : index
    %1 = vector.load %arg2[%c0_1, %c0_2] : memref<128x384xf32, #tpu.memory_space<vmem>>, vector<128x384xf32>
    %cst = arith.constant dense<0.000000e+00> : vector<8x384xf32>
    %2 = tpu.matmul %0, %1, %cst {dimension_numbers = #tpu.dot_dimension_numbers<[1], [0], [0], [1], [0, 0, 1, 1], [], []>} : vector<8x128xf32>, vector<128x384xf32>, vector<8x384xf32> -> vector<8x384xf32>
    %3 = vector.extract_strided_slice %2 {offsets = [0, 0], sizes = [8, 128], strides = [1, 1]} : vector<8x384xf32> to vector<8x128xf32>
    %4 = vector.extract_strided_slice %2 {offsets = [0, 128], sizes = [8, 128], strides = [1, 1]} : vector<8x384xf32> to vector<8x128xf32>
    %5 = vector.extract_strided_slice %2 {offsets = [0, 256], sizes = [8, 128], strides = [1, 1]} : vector<8x384xf32> to vector<8x128xf32>
    %6 = tpu.iota {dimensions = array<i32: 0>} : vector<8x1xi32>
    %c2_i32 = arith.constant 2 : i32
    %c0_i32 = arith.constant 0 : i32
    %7 = arith.cmpi eq, %c2_i32, %c0_i32 : i32
    %c1_i32 = arith.constant 1 : i32
    %8 = arith.select %7, %c1_i32, %c2_i32 : i32
    %9 = vector.broadcast %8 : i32 to vector<8x1xi32>
    %10 = arith.remsi %6, %9 : vector<8x1xi32>
    %c0_i32_3 = arith.constant 0 : i32
    %11 = vector.broadcast %c0_i32_3 : i32 to vector<8x1xi32>
    %12 = arith.cmpi ne, %10, %11 : vector<8x1xi32>
    %c0_i32_4 = arith.constant 0 : i32
    %13 = vector.broadcast %c0_i32_4 : i32 to vector<8x1xi32>
    %14 = arith.cmpi slt, %10, %13 : vector<8x1xi32>
    %c0_i32_5 = arith.constant 0 : i32
    %15 = arith.cmpi slt, %8, %c0_i32_5 : i32
    %16 = vector.broadcast %15 : i1 to vector<8x1xi1>
    %17 = vector.broadcast %16 : vector<8x1xi1> to vector<8x1xi1>
    %18 = arith.xori %14, %17 : vector<8x1xi1>
    %19 = arith.andi %18, %12 : vector<8x1xi1>
    %20 = vector.broadcast %8 : i32 to vector<8x1xi32>
    %21 = arith.addi %10, %20 : vector<8x1xi32>
    %22 = arith.select %19, %21, %10 : vector<8x1xi1>, vector<8x1xi32>
    %c0_i32_6 = arith.constant 0 : i32
    %23 = vector.broadcast %c0_i32_6 : i32 to vector<8x1xi32>
    %24 = arith.cmpi ne, %22, %23 : vector<8x1xi32>
    %25 = arith.extui %24 : vector<8x1xi1> to vector<8x1xi32>
    %26 = arith.sitofp %25 : vector<8x1xi32> to vector<8x1xf32>
    %c1_i32_7 = arith.constant 1 : i32
    %27 = vector.broadcast %c1_i32_7 : i32 to vector<8x1xi32>
    %28 = arith.cmpi ne, %22, %27 : vector<8x1xi32>
    %29 = arith.extui %28 : vector<8x1xi1> to vector<8x1xi32>
    %30 = arith.sitofp %29 : vector<8x1xi32> to vector<8x1xf32>
    %c1_i32_8 = arith.constant 1 : i32
    %31 = tpu.dynamic_rotate %3 by %c1_i32_8 dim 0 : vector<8x128xf32>, i32 -> vector<8x128xf32>
    %32 = vector.broadcast %26 : vector<8x1xf32> to vector<8x128xf32>
    %33 = arith.mulf %31, %32 : vector<8x128xf32>
    %c7_i32 = arith.constant 7 : i32
    %34 = tpu.dynamic_rotate %5 by %c7_i32 dim 0 : vector<8x128xf32>, i32 -> vector<8x128xf32>
    %35 = vector.broadcast %30 : vector<8x1xf32> to vector<8x128xf32>
    %36 = arith.mulf %34, %35 : vector<8x128xf32>
    %37 = arith.addf %33, %4 : vector<8x128xf32>
    %38 = arith.addf %37, %36 : vector<8x128xf32>
    %c0_9 = arith.constant 0 : index
    %c0_10 = arith.constant 0 : index
    %39 = vector.load %arg3[%c0_9, %c0_10] : memref<1x128xf32, #tpu.memory_space<vmem>>, vector<1x128xf32>
    %40 = vector.broadcast %39 : vector<1x128xf32> to vector<8x128xf32>
    %41 = arith.addf %38, %40 : vector<8x128xf32>
    %cst_11 = arith.constant 0.000000e+00 : f32
    %42 = vector.broadcast %cst_11 : f32 to vector<8x128xf32>
    %43 = arith.maximumf %41, %42 : vector<8x128xf32>
    %c0_12 = arith.constant 0 : index
    %c0_13 = arith.constant 0 : index
    %44 = vector.load %arg4[%c0_12, %c0_13] : memref<8x128xf32, #tpu.memory_space<vmem>>, vector<8x128xf32>
    tpu.vector_store %arg4[%c0_12, %c0_13], %43 {strides = array<i32>} : memref<8x128xf32, #tpu.memory_space<vmem>>, vector<8x128xf32>,
    return
  }
  func.func @transform_0(%arg0: i32) -> (i32, i32) {
    %c0_i32 = arith.constant 0 : i32
    %c0_i32_0 = arith.constant 0 : i32
    return %arg0, %c0_i32 : i32, i32
  }
  func.func @transform_1(%arg0: i32) -> (i32, i32) {
    %c0_i32 = arith.constant 0 : i32
    %c0_i32_0 = arith.constant 0 : i32
    %c0_i32_1 = arith.constant 0 : i32
    return %c0_i32, %c0_i32_0 : i32, i32
  }
  func.func @transform_2(%arg0: i32) -> (i32, i32) {
    %c0_i32 = arith.constant 0 : i32
    %c0_i32_0 = arith.constant 0 : i32
    %c0_i32_1 = arith.constant 0 : i32
    return %c0_i32, %c0_i32_0 : i32, i32
  }
  func.func @transform_3(%arg0: i32) -> (i32, i32) {
    %c0_i32 = arith.constant 0 : i32
    %c0_i32_0 = arith.constant 0 : i32
    return %arg0, %c0_i32 : i32, i32
  }
}

</mosaic_0001>

<llo_original>
// kernel: tpu_custom_call.1
$region0: #{tpu_custom_call.1}
  #allocation0 [shape = 'u32[]', space=smem, size = 0x4, offset = 0x4, fixed_abs, tag = 'smem constant byte address 0x4 - core index']
  #allocation1 [shape = 'u32[72,128]{1,0:T(1,128)}', space=vmem, size = 0x9000, scoped, tag = 'internal scratch']
  %s0 = inlined_call_operand.hbm [shape: f32[8,128], index: 0, kind: input, shape index: {}]
  %s1 = inlined_call_operand.hbm [shape: f32[128,384], index: 1, kind: input, shape index: {}]
  %s2 = inlined_call_operand.vmem [shape: f32[1,128], index: 2, kind: input, shape index: {}]
  %s3 = inlined_call_operand.hbm [shape: f32[8,128], index: 3, kind: output, shape index: {}]
  %s4 = sld [smem:[#allocation0]]
  $region30: #{tpu_custom_call.1} parent=0
    _
  %s6 = ssub.s32 1, %s4
  %s7 = scalar_select 0, %s6, %s4
  $region1: #{tpu_custom_call.1} parent=0
    #allocation2 [shape = 'u8[4096]{0}', space=vmem, size = 0x1000, scoped, tag = 'input window, operand 0, single buffered']
    #allocation3 [shape = 's32[1]{0}', space=sflag, size = 0x4, scoped, tag = 'scoped memory for tpu_custom_call.1']
    #allocation4 [shape = 's32[1]{0}', space=sflag, size = 0x4, scoped, tag = 'scoped memory for tpu_custom_call.1']
    #allocation5 [shape = 'u8[196608]{0}', space=vmem, size = 0x30000, scoped, tag = 'input window, operand 1, single buffered']
    #allocation6 [shape = 's32[1]{0}', space=sflag, size = 0x4, scoped, tag = 'scoped memory for tpu_custom_call.1']
    #allocation7 [shape = 'u8[4096]{0}', space=vmem, size = 0x1000, scoped, tag = 'output window, operand 0, single buffered']
    %8 = vsyncpa [#allocation3], 0
    %9 = vsyncpa [#allocation6], 0
    %10 = vsyncpa [#allocation4], 0
    // Predicated region
    $region2: #{tpu_custom_call.1} parent=1 // pred_check
      _
    $region3: #{tpu_custom_call.1} parent=1 // pred_check_branch
      %12 = sbr.rel (0) target = $region5
    $region4: #{tpu_custom_call.1} parent=1 // pred_region
      %14 = vsyncadd [#allocation3], 0
      %s16 = sshll.u32 %s0, 4
      %s17 = int_to_ptr.hbm [resolvable:$true] %s16
      %s18 = sshll.u32 [#allocation2], 4
      %s19 = int_to_ptr.vmem [resolvable:$true] %s18
      %21 = dma.hbm_to_vmem [thread:$0]  %s17, 128, %s19, [#allocation3]
    $region5: #{tpu_custom_call.1} parent=1 // pred_fallthru
      _
    // Predicated region
    $region6: #{tpu_custom_call.1} parent=1 // pred_check
      _
    $region7: #{tpu_custom_call.1} parent=1 // pred_check_branch
      %23 = sbr.rel (0) target = $region9
    $region8: #{tpu_custom_call.1} parent=1 // pred_region
      %25 = vsyncadd [#allocation6], 0
      %s26 = sshll.u32 %s1, 4
      %s27 = int_to_ptr.hbm [resolvable:$true] %s26
      %s28 = sshll.u32 [#allocation5], 4
      %s29 = int_to_ptr.vmem [resolvable:$true] %s28
      %34 = dma.hbm_to_vmem [thread:$0]  %s27, 6144, %s29, [#allocation6], 384, 384, 24
    $region9: #{tpu_custom_call.1} parent=1 // pred_fallthru
      _
    // Predicated region
    $region10: #{tpu_custom_call.1} parent=1 // pred_check
      _
    $region11: #{tpu_custom_call.1} parent=1 // pred_check_branch
      %36 = sbr.rel (0) target = $region13
    $region12: #{tpu_custom_call.1} parent=1 // pred_region
      _
    $region13: #{tpu_custom_call.1} parent=1 // pred_fallthru
      _
    // Predicated region
    $region14: #{tpu_custom_call.1} parent=1 // pred_check
      _
    $region15: #{tpu_custom_call.1} parent=1 // pred_check_branch
      %38 = sbr.rel (0) target = $region17
    $region16: #{tpu_custom_call.1} parent=1 // pred_region
      %40 = dma.done [#allocation3], 128
    $region17: #{tpu_custom_call.1} parent=1 // pred_fallthru
      _
    // Predicated region
    $region18: #{tpu_custom_call.1} parent=1 // pred_check
      _
    $region19: #{tpu_custom_call.1} parent=1 // pred_check_branch
      %42 = sbr.rel (0) target = $region21
    $region20: #{tpu_custom_call.1} parent=1 // pred_region
      %44 = dma.done [#allocation6], 6144
    $region21: #{tpu_custom_call.1} parent=1 // pred_fallthru
      _
    %v45 = vld [vmem:[#allocation2] sm:$0xff]
    %v46 = vld [vmem:[#allocation5] sm:$0xff]
    %v47 = vld [vmem:[#allocation5 + $0x8] sm:$0xff]
    %v48 = vld [vmem:[#allocation5 + $0x10] sm:$0xff]
    %v49 = vld [vmem:[#allocation5 + $0x18] sm:$0xff]
    %v50 = vld [vmem:[#allocation5 + $0x20] sm:$0xff]
    %v51 = vld [vmem:[#allocation5 + $0x28] sm:$0xff]
    %v52 = vld [vmem:[#allocation5 + $0x30] sm:$0xff]
    %v53 = vld [vmem:[#allocation5 + $0x38] sm:$0xff]
    %v54 = vld [vmem:[#allocation5 + $0x40] sm:$0xff]
    %v55 = vld [vmem:[#allocation5 + $0x48] sm:$0xff]
    %v56 = vld [vmem:[#allocation5 + $0x50] sm:$0xff]
    %v57 = vld [vmem:[#allocation5 + $0x58] sm:$0xff]
    %v58 = vld [vmem:[#allocation5 + $0x60] sm:$0xff]
    %v59 = vld [vmem:[#allocation5 + $0x68] sm:$0xff]
    %v60 = vld [vmem:[#allocation5 + $0x70] sm:$0xff]
    %v61 = vld [vmem:[#allocation5 + $0x78] sm:$0xff]
    %v62 = vld [vmem:[#allocation5 + $0x80] sm:$0xff]
    %v63 = vld [vmem:[#allocation5 + $0x88] sm:$0xff]
    %v64 = vld [vmem:[#allocation5 + $0x90] sm:$0xff]
    %v65 = vld [vmem:[#allocation5 + $0x98] sm:$0xff]
    %v66 = vld [vmem:[#allocation5 + $0xa0] sm:$0xff]
    %v67 = vld [vmem:[#allocation5 + $0xa8] sm:$0xff]
    %v68 = vld [vmem:[#allocation5 + $0xb0] sm:$0xff]
    %v69 = vld [vmem:[#allocation5 + $0xb8] sm:$0xff]
    %v70 = vld [vmem:[#allocation5 + $0xc0] sm:$0xff]
    %v71 = vld [vmem:[#allocation5 + $0xc8] sm:$0xff]
    %v72 = vld [vmem:[#allocation5 + $0xd0] sm:$0xff]
    %v73 = vld [vmem:[#allocation5 + $0xd8] sm:$0xff]
    %v74 = vld [vmem:[#allocation5 + $0xe0] sm:$0xff]
    %v75 = vld [vmem:[#allocation5 + $0xe8] sm:$0xff]
    %v76 = vld [vmem:[#allocation5 + $0xf0] sm:$0xff]
    %v77 = vld [vmem:[#allocation5 + $0xf8] sm:$0xff]
    %v78 = vld [vmem:[#allocation5 + $0x100] sm:$0xff]
    %v79 = vld [vmem:[#allocation5 + $0x108] sm:$0xff]
    %v80 = vld [vmem:[#allocation5 + $0x110] sm:$0xff]
    %v81 = vld [vmem:[#allocation5 + $0x118] sm:$0xff]
    %v82 = vld [vmem:[#allocation5 + $0x120] sm:$0xff]
    %v83 = vld [vmem:[#allocation5 + $0x128] sm:$0xff]
    %v84 = vld [vmem:[#allocation5 + $0x130] sm:$0xff]
    %v85 = vld [vmem:[#allocation5 + $0x138] sm:$0xff]
    %v86 = vld [vmem:[#allocation5 + $0x140] sm:$0xff]
    %v87 = vld [vmem:[#allocation5 + $0x148] sm:$0xff]
    %v88 = vld [vmem:[#allocation5 + $0x150] sm:$0xff]
    %v89 = vld [vmem:[#allocation5 + $0x158] sm:$0xff]
    %v90 = vld [vmem:[#allocation5 + $0x160] sm:$0xff]
    %v91 = vld [vmem:[#allocation5 + $0x168] sm:$0xff]
    %v92 = vld [vmem:[#allocation5 + $0x170] sm:$0xff]
    %v93 = vld [vmem:[#allocation5 + $0x178] sm:$0xff]
    %94 = vmatpush.msra.mxu0 %v91
    %95 = vmatpush.msra.mxu0 %v88
    %96 = vmatpush.msra.mxu0 %v85
    %97 = vmatpush.msra.mxu0 %v82
    %98 = vmatpush.msra.mxu0 %v79
    %99 = vmatpush.msra.mxu0 %v76
    %100 = vmatpush.msra.mxu0 %v73
    %101 = vmatpush.msra.mxu0 %v70
    %102 = vmatpush.msra.mxu0 %v67
    %103 = vmatpush.msra.mxu0 %v64
    %104 = vmatpush.msra.mxu0 %v61
    %105 = vmatpush.msra.mxu0 %v58
    %106 = vmatpush.msra.mxu0 %v55
    %107 = vmatpush.msra.mxu0 %v52
    %108 = vmatpush.msra.mxu0 %v49
    %109 = vmatpush.msra.mxu0 %v46
    %110 = vmatmul.f32.gmra.mxu0 %v45
    %v111 = vpop.f32.mrf.mxu0
    %v112 = vadd.f32 0.0, %v111
    %113 = vdwg.mxu0
    %114 = vmatpush.msra.mxu0 %v92
    %115 = vmatpush.msra.mxu0 %v89
    %116 = vmatpush.msra.mxu0 %v86
    %117 = vmatpush.msra.mxu0 %v83
    %118 = vmatpush.msra.mxu0 %v80
    %119 = vmatpush.msra.mxu0 %v77
    %120 = vmatpush.msra.mxu0 %v74
    %121 = vmatpush.msra.mxu0 %v71
    %122 = vmatpush.msra.mxu0 %v68
    %123 = vmatpush.msra.mxu0 %v65
    %124 = vmatpush.msra.mxu0 %v62
    %125 = vmatpush.msra.mxu0 %v59
    %126 = vmatpush.msra.mxu0 %v56
    %127 = vmatpush.msra.mxu0 %v53
    %128 = vmatpush.msra.mxu0 %v50
    %129 = vmatpush.msra.mxu0 %v47
    %130 = vmatmul.f32.gmra.mxu0 %v45
    %v131 = vpop.f32.mrf.mxu0
    %v132 = vadd.f32 0.0, %v131
    %133 = vdwg.mxu0
    %134 = vmatpush.msra.mxu0 %v93
    %135 = vmatpush.msra.mxu0 %v90
    %136 = vmatpush.msra.mxu0 %v87
    %137 = vmatpush.msra.mxu0 %v84
    %138 = vmatpush.msra.mxu0 %v81
    %139 = vmatpush.msra.mxu0 %v78
    %140 = vmatpush.msra.mxu0 %v75
    %141 = vmatpush.msra.mxu0 %v72
    %142 = vmatpush.msra.mxu0 %v69
    %143 = vmatpush.msra.mxu0 %v66
    %144 = vmatpush.msra.mxu0 %v63
    %145 = vmatpush.msra.mxu0 %v60
    %146 = vmatpush.msra.mxu0 %v57
    %147 = vmatpush.msra.mxu0 %v54
    %148 = vmatpush.msra.mxu0 %v51
    %149 = vmatpush.msra.mxu0 %v48
    %150 = vmatmul.f32.gmra.mxu0 %v45
    %v151 = vpop.f32.mrf.mxu0
    %v152 = vadd.f32 0.0, %v151
    %153 = vdwg.mxu0
    %v154 = vlaneseq
    %v155 = vshrl.u32 %v154, 7
    %vm156 = vcmp.lt.s32.totalorder %v155, 0
    %v157 = vsub.s32 0, %v155
    %v158 = vsel %vm156, %v157, %v155
    %v159 = vshrl.u32 %v158, 1
    %v160 = vand.u32 %v158, 1
    %v161 = vsub.s32 0, %v160
    %v162 = vsel %vm156, %v161, %v160
    %vm163 = vcmp.ne.s32.totalorder %v162, 0
    %vm164 = vcmp.lt.s32.totalorder %v162, 0
    %vm165 = vmand %vm164, %vm163
    %v166 = vadd.s32 %v162, 2
    %v167 = vsel %vm165, %v166, %v162
    %vm168 = vcmp.ne.s32.totalorder %v167, 0
    %v169 = vsel %vm168, 1, 0
    %v170 = vcvt.s32.f32 %v169
    %vm171 = vcmp.ne.s32.totalorder %v167, 1
    %v172 = vsel %vm171, 1, 0
    %v173 = vcvt.s32.f32 %v172
    %v174 = vrot.slane %v112, 7
    %v175 = vmul.f32 %v174, %v170
    %v176 = vrot.slane %v152, 1
    %v177 = vmul.f32 %v176, %v173
    %v178 = vadd.f32 %v175, %v132
    %v179 = vadd.f32 %v178, %v177
    %v180 = vld [vmem:[%s2] sm:$0x1]
    %v182 = vperm.slane %v180, 0
    %v184 = vadd.f32 %v179, %v182
    %v185 = vmax.f32 %v184, 0.0
    %186 = vst [vmem:[#allocation7] sm:$0xff] %v185
    // Predicated region
    $region22: #{tpu_custom_call.1} parent=1 // pred_check
      _
    $region23: #{tpu_custom_call.1} parent=1 // pred_check_branch
      %188 = sbr.rel (0) target = $region25
    $region24: #{tpu_custom_call.1} parent=1 // pred_region
      %190 = vsyncadd [#allocation4], 0
      %s192 = sshll.u32 [#allocation7], 4
      %s193 = int_to_ptr.vmem [resolvable:$true] %s192
      %s194 = sshll.u32 %s3, 4
      %s195 = int_to_ptr.hbm [resolvable:$true] %s194
      %197 = dma.vmem_to_hbm [thread:$0]  %s193, 128, %s195, [#allocation4]
    $region25: #{tpu_custom_call.1} parent=1 // pred_fallthru
      _
    // Predicated region
    $region26: #{tpu_custom_call.1} parent=1 // pred_check
      _
    $region27: #{tpu_custom_call.1} parent=1 // pred_check_branch
      %199 = sbr.rel (0) target = $region29
    $region28: #{tpu_custom_call.1} parent=1 // pred_region
      %201 = dma.done [#allocation4], 128
    $region29: #{tpu_custom_call.1} parent=1 // pred_fallthru
      _
    %202 = vsyncpa [#allocation3], 1
    %203 = vsyncpa [#allocation6], 1
    %204 = vsyncpa [#allocation4], 1

</llo_original>
